<compile_context>
chip_gen: v6e
topology: v6e:2x2x1
jax: 0.10.0
libtpu: 0.0.40
codegen_flags: <defaults>
</compile_context>

<pallas_src>
import functools

import jax
import jax.numpy as jnp
from jax.experimental import pallas as pl
from jax.experimental.pallas import tpu as pltpu


def model_resnet_kernel(x_ref, w_in_T_ref, b_in_ref,
                        w1_T_ref, w2_T_ref,
                        w_out_T_ref, b_out_ref, o_ref, *, num_blocks):
    # Input head: h = relu(x @ W_in^T + b_in); bf16 MXU inputs, f32 accumulate.
    xb = x_ref[...].astype(jnp.bfloat16)                      # (B, Cin)
    h = jnp.dot(xb, w_in_T_ref[...],
                preferred_element_type=jnp.float32)           # (B, f) f32
    h = jnp.maximum(h + b_in_ref[...], 0.0)

    # Residual trunk (statically unrolled; num_blocks is a small constant).
    for i in range(num_blocks):
        y = jnp.dot(h.astype(jnp.bfloat16), w1_T_ref[i],
                    preferred_element_type=jnp.float32)
        y = jnp.maximum(y, 0.0)
        y = jnp.dot(y.astype(jnp.bfloat16), w2_T_ref[i],
                    preferred_element_type=jnp.float32)
        y = jnp.maximum(y, 0.0)
        h = y + h                                             # skip-add in f32

    # Output head: o = h @ W_out^T + b_out
    o = jnp.dot(h.astype(jnp.bfloat16), w_out_T_ref[...],
                preferred_element_type=jnp.float32)
    o_ref[...] = (o + b_out_ref[...]).astype(o_ref.dtype)


def prepare_params(w_in, b_in, trunk_w1, trunk_w2, w_out, b_out):
    """ONE-TIME weight prep (at load time, not per forward call).

    nn.Linear layout in -> transposed x @ W^T layout, matmul operands cast to
    bf16 (MXU-native), biases kept f32 as (1, C) rows.
    """
    return dict(
        w_in_T=w_in.T.astype(jnp.bfloat16),                     # (Cin, f)
        b_in=b_in.reshape(1, -1).astype(jnp.float32),            # (1, f)
        w1_T=jnp.transpose(trunk_w1, (0, 2, 1)).astype(jnp.bfloat16),  # (nb,f,f)
        w2_T=jnp.transpose(trunk_w2, (0, 2, 1)).astype(jnp.bfloat16),  # (nb,f,f)
        w_out_T=w_out.T.astype(jnp.bfloat16),                    # (f, Cout)
        b_out=b_out.reshape(1, -1).astype(jnp.float32),           # (1, Cout)
    )


def model_resnet(x, params):
    """Forward of Model_ResNet. x: (B, Game_Input_C) f32, params from prepare_params."""
    B, Cin = x.shape
    f = params["w_in_T"].shape[1]
    Cout = params["w_out_T"].shape[1]
    nb = params["w1_T"].shape[0]

    flops = 2 * B * (Cin * f + 2 * nb * f * f + f * Cout)
    bytes_accessed = (
        x.size * 4
        + params["w_in_T"].size * 2 + params["b_in"].size * 4
        + params["w1_T"].size * 2 + params["w2_T"].size * 2
        + params["w_out_T"].size * 2 + params["b_out"].size * 4
        + B * Cout * 4)

    kernel = functools.partial(model_resnet_kernel, num_blocks=nb)

    # Grid-less call: every operand and the output live whole in VMEM
    # (total footprint << 1 MiB), no pipelining machinery.
    vmem_specs = [pl.BlockSpec(memory_space=pltpu.MemorySpace.VMEM)
                  for _ in range(7)]

    return pl.pallas_call(
        kernel,
        out_shape=jax.ShapeDtypeStruct((B, Cout), jnp.float32),
        in_specs=vmem_specs,
        out_specs=pl.BlockSpec(memory_space=pltpu.MemorySpace.VMEM),
        cost_estimate=pl.CostEstimate(flops=flops, transcendentals=0,
                                      bytes_accessed=bytes_accessed),
    )(x, params["w_in_T"], params["b_in"], params["w1_T"], params["w2_T"],
      params["w_out_T"], params["b_out"])


def model_resnet_ref_mixed(x, params):
    """Pure-JAX reference mirroring the kernel's bf16-matmul / f32-elementwise math."""
    bf = jnp.bfloat16
    h = jnp.dot(x.astype(bf), params["w_in_T"], preferred_element_type=jnp.float32)
    h = jnp.maximum(h + params["b_in"], 0.0)
    for i in range(params["w1_T"].shape[0]):
        y = jnp.dot(h.astype(bf), params["w1_T"][i], preferred_element_type=jnp.float32)
        y = jnp.maximum(y, 0.0)
        y = jnp.dot(y.astype(bf), params["w2_T"][i], preferred_element_type=jnp.float32)
        y = jnp.maximum(y, 0.0)
        h = y + h
    o = jnp.dot(h.astype(bf), params["w_out_T"], preferred_element_type=jnp.float32)
    return o + params["b_out"]


def model_resnet_ref_f32(x, w_in, b_in, trunk_w1, trunk_w2, w_out, b_out):
    """Full-f32 reference of the original PyTorch Model_ResNet.forward (spec fidelity)."""
    h = jax.nn.relu(x @ w_in.T + b_in)
    for i in range(trunk_w1.shape[0]):
        y = jax.nn.relu(h @ trunk_w1[i].T)
        y = jax.nn.relu(y @ trunk_w2[i].T)
        h = y + h
    return h @ w_out.T + b_out


if __name__ == "__main__":
    # Small shapes consistent with the module; batch aligned to MXU rows.
    GAME_INPUT_C = 32    # Game_Input_C
    GAME_OUTPUT_C = 16   # Game_Output_C
    NUM_BLOCKS = 2       # b
    F = 64               # f
    BATCH = 128

    key = jax.random.PRNGKey(0)
    kx, k_in, kb_in, k1, k2, k_out, kb_out = jax.random.split(key, 7)

    x = jax.random.normal(kx, (BATCH, GAME_INPUT_C), dtype=jnp.float32)

    # nn.Linear weights are (out_features, in_features).
    w_in = jax.random.normal(k_in, (F, GAME_INPUT_C), jnp.float32) / jnp.sqrt(GAME_INPUT_C)
    b_in = jax.random.normal(kb_in, (F,), jnp.float32) * 0.1
    trunk_w1 = jax.random.normal(k1, (NUM_BLOCKS, F, F), jnp.float32) / jnp.sqrt(F)
    trunk_w2 = jax.random.normal(k2, (NUM_BLOCKS, F, F), jnp.float32) / jnp.sqrt(F)
    w_out = jax.random.normal(k_out, (GAME_OUTPUT_C, F), jnp.float32) / jnp.sqrt(F)
    b_out = jax.random.normal(kb_out, (GAME_OUTPUT_C,), jnp.float32) * 0.1

    # Weight prep happens once, outside the per-forward path.
    params = jax.tree_util.tree_map(jax.block_until_ready,
                                    prepare_params(w_in, b_in, trunk_w1,
                                                   trunk_w2, w_out, b_out))

    out = model_resnet(x, params)
    out = jax.block_until_ready(out)

    assert out.shape == (BATCH, GAME_OUTPUT_C) and out.dtype == jnp.float32

    # Exact-math mirror (bf16 matmuls, f32 accumulate/elementwise): tight check.
    ref_mixed = model_resnet_ref_mixed(x, params)
    assert jnp.allclose(out, ref_mixed, atol=2e-3, rtol=1e-3), "mismatch vs mixed-precision reference"

    # Full-f32 spec reference: loose check (bf16 matmul rounding only).
    ref_f32 = model_resnet_ref_f32(x, w_in, b_in, trunk_w1, trunk_w2, w_out, b_out)
    assert jnp.allclose(out, ref_f32, atol=5e-2, rtol=5e-2), "mismatch vs f32 reference"

    print("KERNEL_OK")
</pallas_src>

<mosaic_0001>
module attributes {stable_mosaic.version = 11 : i64} {
  func.func @model_resnet_kernel(%arg0: memref<128x32xf32, #tpu.memory_space<vmem>>, %arg1: memref<32x64xbf16, #tpu.memory_space<vmem>>, %arg2: memref<1x64xf32, #tpu.memory_space<vmem>>, %arg3: memref<2x64x64xbf16, #tpu.memory_space<vmem>>, %arg4: memref<2x64x64xbf16, #tpu.memory_space<vmem>>, %arg5: memref<64x16xbf16, #tpu.memory_space<vmem>>, %arg6: memref<1x16xf32, #tpu.memory_space<vmem>>, %arg7: memref<128x16xf32, #tpu.memory_space<vmem>>) attributes {dimension_semantics = [], scalar_prefetch = 0 : i64, scratch_operands = 0 : i64, tpu.core_type = #tpu.core_type<tc>} {
    %c0 = arith.constant 0 : index
    %c0_0 = arith.constant 0 : index
    %0 = vector.load %arg0[%c0, %c0_0] : memref<128x32xf32, #tpu.memory_space<vmem>>, vector<128x32xf32>
    %1 = arith.truncf %0 : vector<128x32xf32> to vector<128x32xbf16>
    %c0_1 = arith.constant 0 : index
    %c0_2 = arith.constant 0 : index
    %2 = vector.load %arg1[%c0_1, %c0_2] : memref<32x64xbf16, #tpu.memory_space<vmem>>, vector<32x64xbf16>
    %cst = arith.constant dense<0.000000e+00> : vector<128x64xf32>
    %3 = tpu.matmul %1, %2, %cst {dimension_numbers = #tpu.dot_dimension_numbers<[1], [0], [0], [1], [0, 0, 1, 1], [], []>} : vector<128x32xbf16>, vector<32x64xbf16>, vector<128x64xf32> -> vector<128x64xf32>
    %c0_3 = arith.constant 0 : index
    %c0_4 = arith.constant 0 : index
    %4 = vector.load %arg2[%c0_3, %c0_4] : memref<1x64xf32, #tpu.memory_space<vmem>>, vector<1x64xf32>
    %5 = vector.broadcast %4 : vector<1x64xf32> to vector<128x64xf32>
    %6 = arith.addf %3, %5 : vector<128x64xf32>
    %cst_5 = arith.constant 0.000000e+00 : f32
    %7 = vector.broadcast %cst_5 : f32 to vector<128x64xf32>
    %8 = arith.maximumf %6, %7 : vector<128x64xf32>
    %9 = arith.truncf %8 : vector<128x64xf32> to vector<128x64xbf16>
    %c0_6 = arith.constant 0 : index
    %c0_7 = arith.constant 0 : index
    %c0_8 = arith.constant 0 : index
    %10 = vector.load %arg3[%c0_6, %c0_7, %c0_8] : memref<2x64x64xbf16, #tpu.memory_space<vmem>>, vector<1x64x64xbf16>
    %11 = vector.shape_cast %10 : vector<1x64x64xbf16> to vector<64x64xbf16>
    %cst_9 = arith.constant dense<0.000000e+00> : vector<128x64xf32>
    %12 = tpu.matmul %9, %11, %cst_9 {dimension_numbers = #tpu.dot_dimension_numbers<[1], [0], [0], [1], [0, 0, 1, 1], [], []>} : vector<128x64xbf16>, vector<64x64xbf16>, vector<128x64xf32> -> vector<128x64xf32>
    %cst_10 = arith.constant 0.000000e+00 : f32
    %13 = vector.broadcast %cst_10 : f32 to vector<128x64xf32>
    %14 = arith.maximumf %12, %13 : vector<128x64xf32>
    %15 = arith.truncf %14 : vector<128x64xf32> to vector<128x64xbf16>
    %c0_11 = arith.constant 0 : index
    %c0_12 = arith.constant 0 : index
    %c0_13 = arith.constant 0 : index
    %16 = vector.load %arg4[%c0_11, %c0_12, %c0_13] : memref<2x64x64xbf16, #tpu.memory_space<vmem>>, vector<1x64x64xbf16>
    %17 = vector.shape_cast %16 : vector<1x64x64xbf16> to vector<64x64xbf16>
    %cst_14 = arith.constant dense<0.000000e+00> : vector<128x64xf32>
    %18 = tpu.matmul %15, %17, %cst_14 {dimension_numbers = #tpu.dot_dimension_numbers<[1], [0], [0], [1], [0, 0, 1, 1], [], []>} : vector<128x64xbf16>, vector<64x64xbf16>, vector<128x64xf32> -> vector<128x64xf32>
    %cst_15 = arith.constant 0.000000e+00 : f32
    %19 = vector.broadcast %cst_15 : f32 to vector<128x64xf32>
    %20 = arith.maximumf %18, %19 : vector<128x64xf32>
    %21 = arith.addf %20, %8 : vector<128x64xf32>
    %22 = arith.truncf %21 : vector<128x64xf32> to vector<128x64xbf16>
    %c1 = arith.constant 1 : index
    %c0_16 = arith.constant 0 : index
    %c0_17 = arith.constant 0 : index
    %23 = vector.load %arg3[%c1, %c0_16, %c0_17] : memref<2x64x64xbf16, #tpu.memory_space<vmem>>, vector<1x64x64xbf16>
    %24 = vector.shape_cast %23 : vector<1x64x64xbf16> to vector<64x64xbf16>
    %cst_18 = arith.constant dense<0.000000e+00> : vector<128x64xf32>
    %25 = tpu.matmul %22, %24, %cst_18 {dimension_numbers = #tpu.dot_dimension_numbers<[1], [0], [0], [1], [0, 0, 1, 1], [], []>} : vector<128x64xbf16>, vector<64x64xbf16>, vector<128x64xf32> -> vector<128x64xf32>
    %cst_19 = arith.constant 0.000000e+00 : f32
    %26 = vector.broadcast %cst_19 : f32 to vector<128x64xf32>
    %27 = arith.maximumf %25, %26 : vector<128x64xf32>
    %28 = arith.truncf %27 : vector<128x64xf32> to vector<128x64xbf16>
    %c1_20 = arith.constant 1 : index
    %c0_21 = arith.constant 0 : index
    %c0_22 = arith.constant 0 : index
    %29 = vector.load %arg4[%c1_20, %c0_21, %c0_22] : memref<2x64x64xbf16, #tpu.memory_space<vmem>>, vector<1x64x64xbf16>
    %30 = vector.shape_cast %29 : vector<1x64x64xbf16> to vector<64x64xbf16>
    %cst_23 = arith.constant dense<0.000000e+00> : vector<128x64xf32>
    %31 = tpu.matmul %28, %30, %cst_23 {dimension_numbers = #tpu.dot_dimension_numbers<[1], [0], [0], [1], [0, 0, 1, 1], [], []>} : vector<128x64xbf16>, vector<64x64xbf16>, vector<128x64xf32> -> vector<128x64xf32>
    %cst_24 = arith.constant 0.000000e+00 : f32
    %32 = vector.broadcast %cst_24 : f32 to vector<128x64xf32>
    %33 = arith.maximumf %31, %32 : vector<128x64xf32>
    %34 = arith.addf %33, %21 : vector<128x64xf32>
    %35 = arith.truncf %34 : vector<128x64xf32> to vector<128x64xbf16>
    %c0_25 = arith.constant 0 : index
    %c0_26 = arith.constant 0 : index
    %36 = vector.load %arg5[%c0_25, %c0_26] : memref<64x16xbf16, #tpu.memory_space<vmem>>, vector<64x16xbf16>
    %cst_27 = arith.constant dense<0.000000e+00> : vector<128x16xf32>
    %37 = tpu.matmul %35, %36, %cst_27 {dimension_numbers = #tpu.dot_dimension_numbers<[1], [0], [0], [1], [0, 0, 1, 1], [], []>} : vector<128x64xbf16>, vector<64x16xbf16>, vector<128x16xf32> -> vector<128x16xf32>
    %c0_28 = arith.constant 0 : index
    %c0_29 = arith.constant 0 : index
    %38 = vector.load %arg6[%c0_28, %c0_29] : memref<1x16xf32, #tpu.memory_space<vmem>>, vector<1x16xf32>
    %39 = vector.broadcast %38 : vector<1x16xf32> to vector<128x16xf32>
    %40 = arith.addf %37, %39 : vector<128x16xf32>
    %c0_30 = arith.constant 0 : index
    %c0_31 = arith.constant 0 : index
    %41 = vector.load %arg7[%c0_30, %c0_31] : memref<128x16xf32, #tpu.memory_space<vmem>>, vector<128x16xf32>
    tpu.vector_store %arg7[%c0_30, %c0_31], %40 {strides = array<i32>} : memref<128x16xf32, #tpu.memory_space<vmem>>, vector<128x16xf32>,
    return
  }
}

</mosaic_0001>

<llo_original>
// kernel: tpu_custom_call.1
$region0: #{tpu_custom_call.1}
  #allocation0 [shape = 'u32[]', space=smem, size = 0x4, offset = 0x4, fixed_abs, tag = 'smem constant byte address 0x4 - core index']
  #allocation1 [shape = 'u32[144,128]{1,0:T(1,128)}', space=vmem, size = 0x12000, scoped, tag = 'internal scratch']
  %s0 = inlined_call_operand.vmem [shape: f32[128,32], index: 0, kind: input, shape index: {}]
  %s1 = inlined_call_operand.vmem [shape: bf16[32,64], index: 1, kind: input, shape index: {}]
  %s2 = inlined_call_operand.vmem [shape: f32[1,64], index: 2, kind: input, shape index: {}]
  %s3 = inlined_call_operand.vmem [shape: bf16[2,64,64], index: 3, kind: input, shape index: {}]
  %s4 = inlined_call_operand.vmem [shape: bf16[2,64,64], index: 4, kind: input, shape index: {}]
  %s5 = inlined_call_operand.vmem [shape: bf16[64,16], index: 5, kind: input, shape index: {}]
  %s6 = inlined_call_operand.vmem [shape: f32[1,16], index: 6, kind: input, shape index: {}]
  %s7 = inlined_call_operand.vmem [shape: f32[128,16], index: 7, kind: output, shape index: {}]
  %s8 = sld [smem:[#allocation0]]
  $region38: #{tpu_custom_call.1} parent=0
    _
  %s10 = ssub.s32 1, %s8
  %s11 = scalar_select 0, %s10, %s8
  // Predicated region
  $region2: #{tpu_custom_call.1} parent=0 // pred_check
    _
  $region3: #{tpu_custom_call.1} parent=0 // pred_check_branch
    %13 = sbr.rel (0) target = $region5
  $region4: #{tpu_custom_call.1} parent=0 // pred_region
    _
  $region5: #{tpu_custom_call.1} parent=0 // pred_fallthru
    _
  // Predicated region
  $region6: #{tpu_custom_call.1} parent=0 // pred_check
    _
  $region7: #{tpu_custom_call.1} parent=0 // pred_check_branch
    %15 = sbr.rel (0) target = $region9
  $region8: #{tpu_custom_call.1} parent=0 // pred_region
    _
  $region9: #{tpu_custom_call.1} parent=0 // pred_fallthru
    _
  // Predicated region
  $region10: #{tpu_custom_call.1} parent=0 // pred_check
    _
  $region11: #{tpu_custom_call.1} parent=0 // pred_check_branch
    %17 = sbr.rel (0) target = $region13
  $region12: #{tpu_custom_call.1} parent=0 // pred_region
    _
  $region13: #{tpu_custom_call.1} parent=0 // pred_fallthru
    _
  // Predicated region
  $region14: #{tpu_custom_call.1} parent=0 // pred_check
    _
  $region15: #{tpu_custom_call.1} parent=0 // pred_check_branch
    %19 = sbr.rel (0) target = $region17
  $region16: #{tpu_custom_call.1} parent=0 // pred_region
    _
  $region17: #{tpu_custom_call.1} parent=0 // pred_fallthru
    _
  // Predicated region
  $region18: #{tpu_custom_call.1} parent=0 // pred_check
    _
  $region19: #{tpu_custom_call.1} parent=0 // pred_check_branch
    %21 = sbr.rel (0) target = $region21
  $region20: #{tpu_custom_call.1} parent=0 // pred_region
    _
  $region21: #{tpu_custom_call.1} parent=0 // pred_fallthru
    _
  // Predicated region
  $region22: #{tpu_custom_call.1} parent=0 // pred_check
    _
  $region23: #{tpu_custom_call.1} parent=0 // pred_check_branch
    %23 = sbr.rel (0) target = $region25
  $region24: #{tpu_custom_call.1} parent=0 // pred_region
    _
  $region25: #{tpu_custom_call.1} parent=0 // pred_fallthru
    _
  // Predicated region
  $region26: #{tpu_custom_call.1} parent=0 // pred_check
    _
  $region27: #{tpu_custom_call.1} parent=0 // pred_check_branch
    %25 = sbr.rel (0) target = $region29
  $region28: #{tpu_custom_call.1} parent=0 // pred_region
    _
  $region29: #{tpu_custom_call.1} parent=0 // pred_fallthru
    _
  %v27 = vld [vmem:[%s0] sm:$0xff]
  %v28 = vld [vmem:[%s0 + $0x8] sm:$0xff]
  %v29 = vld [vmem:[%s0 + $0x10] sm:$0xff]
  %v30 = vld [vmem:[%s0 + $0x18] sm:$0xff]
  %v31 = vld [vmem:[%s0 + $0x20] sm:$0xff]
  %v32 = vld [vmem:[%s0 + $0x28] sm:$0xff]
  %v33 = vld [vmem:[%s0 + $0x30] sm:$0xff]
  %v34 = vld [vmem:[%s0 + $0x38] sm:$0xff]
  %v35 = vld [vmem:[%s0 + $0x40] sm:$0xff]
  %v36 = vld [vmem:[%s0 + $0x48] sm:$0xff]
  %v37 = vld [vmem:[%s0 + $0x50] sm:$0xff]
  %v38 = vld [vmem:[%s0 + $0x58] sm:$0xff]
  %v39 = vld [vmem:[%s0 + $0x60] sm:$0xff]
  %v40 = vld [vmem:[%s0 + $0x68] sm:$0xff]
  %v41 = vld [vmem:[%s0 + $0x70] sm:$0xff]
  %v42 = vld [vmem:[%s0 + $0x78] sm:$0xff]
  %v43 = vpack.c.bf16 %v28, %v27
  %v44 = vpack.c.bf16 %v30, %v29
  %v45 = vpack.c.bf16 %v32, %v31
  %v46 = vpack.c.bf16 %v34, %v33
  %v47 = vpack.c.bf16 %v36, %v35
  %v48 = vpack.c.bf16 %v38, %v37
  %v49 = vpack.c.bf16 %v40, %v39
  %v50 = vpack.c.bf16 %v42, %v41
  %v51 = vld [vmem:[%s1] sm:$0xf]
  %v52 = vld [vmem:[%s1 + $0x4] sm:$0xf]
  %v53 = vld [vmem:[%s1 + $0x8] sm:$0xf]
  %v54 = vld [vmem:[%s1 + $0xc] sm:$0xf]
  %v55 = vld [vmem:[%s2] sm:$0x1]
  %v57 = vlaneseq
  %v58 = vshrl.u32 %v57, 7
  %v59 = vsub.s32 0, %v58
  %v60 = vrot.slane %v55, %v59
  %v66 = vunpack.c.l.b16 %v51
  %v67 = vunpack.c.l.b16 %v52
  %v68 = vunpack.c.l.b16 %v53
  %v69 = vunpack.c.l.b16 %v54
  %v70 = vpack.c.b16 %v67, %v66
  %v71 = vpack.c.b16 %v69, %v68
  %vm74 = vcmask 261120
  %v76 = vsel %vm74, %v43, 0
  %v79 = vsel %vm74, %v44, 0
  %v82 = vsel %vm74, %v45, 0
  %v85 = vsel %vm74, %v46, 0
  %v88 = vsel %vm74, %v47, 0
  %v91 = vsel %vm74, %v48, 0
  %v94 = vsel %vm74, %v49, 0
  %v97 = vsel %vm74, %v50, 0
  %99 = vmatprep.subr.bf16.mxu0 0
  %100 = vmatpush1.bf16.msra.mxu0 0
  %101 = vmatprep.subr.bf16.mxu0 0
  %102 = vmatpush1.bf16.msra.mxu0 0
  %103 = vmatprep.subr.bf16.mxu0 0
  %104 = vmatpush1.bf16.msra.mxu0 0
  %105 = vmatprep.subr.bf16.mxu0 0
  %106 = vmatpush1.bf16.msra.mxu0 0
  %107 = vmatprep.subr.bf16.mxu0 0
  %108 = vmatpush1.bf16.msra.mxu0 0
  %109 = vmatprep.subr.bf16.mxu0 0
  %110 = vmatpush1.bf16.msra.mxu0 0
  %111 = vmatprep.subr.bf16.mxu0 0
  %112 = vmatpush1.bf16.msra.mxu0 %v71
  %113 = vmatprep.subr.bf16.mxu0 0
  %114 = vmatpush1.bf16.msra.mxu0 %v70
  %115 = vmatprep.subr.bf16.mxu0 0
  %116 = vmatpush2.bf16.msra.mxu0 0
  %117 = vmatprep.subr.bf16.mxu0 0
  %118 = vmatpush2.bf16.msra.mxu0 0
  %119 = vmatprep.subr.bf16.mxu0 0
  %120 = vmatpush2.bf16.msra.mxu0 0
  %121 = vmatprep.subr.bf16.mxu0 0
  %122 = vmatpush2.bf16.msra.mxu0 0
  %123 = vmatprep.subr.bf16.mxu0 0
  %124 = vmatpush2.bf16.msra.mxu0 0
  %125 = vmatprep.subr.bf16.mxu0 0
  %126 = vmatpush2.bf16.msra.mxu0 0
  %127 = vmatprep.subr.bf16.mxu0 0
  %128 = vmatpush2.bf16.msra.mxu0 0
  %129 = vmatprep.subr.bf16.mxu0 0
  %130 = vmatpush2.bf16.msra.mxu0 0
  %131 = vmatprep.mubr.bf16.mxu0 0
  %132 = vmatmul.mubr.bf16.gmra.mxu0 %v76
  %v133 = vpop.f32.mrf.mxu0
  %v134 = vadd.f32 %v60, %v133
  %v135 = vpop.f32.mrf.mxu0
  %v136 = vpop.f32.mrf.mxu0
  %v137 = vadd.f32 %v60, %v136
  %v138 = vpop.f32.mrf.mxu0
  %139 = vmatprep.mubr.bf16.mxu0 0
  %140 = vmatmul.mubr.bf16.gmra.mxu0 %v79
  %v141 = vpop.f32.mrf.mxu0
  %v142 = vadd.f32 %v60, %v141
  %v143 = vpop.f32.mrf.mxu0
  %v144 = vpop.f32.mrf.mxu0
  %v145 = vadd.f32 %v60, %v144
  %v146 = vpop.f32.mrf.mxu0
  %147 = vmatprep.mubr.bf16.mxu0 0
  %148 = vmatmul.mubr.bf16.gmra.mxu0 %v82
  %v149 = vpop.f32.mrf.mxu0
  %v150 = vadd.f32 %v60, %v149
  %v151 = vpop.f32.mrf.mxu0
  %v152 = vpop.f32.mrf.mxu0
  %v153 = vadd.f32 %v60, %v152
  %v154 = vpop.f32.mrf.mxu0
  %155 = vmatprep.mubr.bf16.mxu0 0
  %156 = vmatmul.mubr.bf16.gmra.mxu0 %v85
  %v157 = vpop.f32.mrf.mxu0
  %v158 = vadd.f32 %v60, %v157
  %v159 = vpop.f32.mrf.mxu0
  %v160 = vpop.f32.mrf.mxu0
  %v161 = vadd.f32 %v60, %v160
  %v162 = vpop.f32.mrf.mxu0
  %163 = vmatprep.mubr.bf16.mxu0 0
  %164 = vmatmul.mubr.bf16.gmra.mxu0 %v88
  %v165 = vpop.f32.mrf.mxu0
  %v166 = vadd.f32 %v60, %v165
  %v167 = vpop.f32.mrf.mxu0
  %v168 = vpop.f32.mrf.mxu0
  %v169 = vadd.f32 %v60, %v168
  %v170 = vpop.f32.mrf.mxu0
  %171 = vmatprep.mubr.bf16.mxu0 0
  %172 = vmatmul.mubr.bf16.gmra.mxu0 %v91
  %v173 = vpop.f32.mrf.mxu0
  %v174 = vadd.f32 %v60, %v173
  %v175 = vpop.f32.mrf.mxu0
  %v176 = vpop.f32.mrf.mxu0
  %v177 = vadd.f32 %v60, %v176
  %v178 = vpop.f32.mrf.mxu0
  %179 = vmatprep.mubr.bf16.mxu0 0
  %180 = vmatmul.mubr.bf16.gmra.mxu0 %v94
  %v181 = vpop.f32.mrf.mxu0
  %v182 = vadd.f32 %v60, %v181
  %v183 = vpop.f32.mrf.mxu0
  %v184 = vpop.f32.mrf.mxu0
  %v185 = vadd.f32 %v60, %v184
  %v186 = vpop.f32.mrf.mxu0
  %187 = vmatprep.mubr.bf16.mxu0 0
  %188 = vmatmul.mubr.bf16.gmra.mxu0 %v97
  %v189 = vpop.f32.mrf.mxu0
  %v190 = vadd.f32 %v60, %v189
  %v191 = vpop.f32.mrf.mxu0
  %v192 = vpop.f32.mrf.mxu0
  %v193 = vadd.f32 %v60, %v192
  %v194 = vpop.f32.mrf.mxu0
  %195 = vdwg.mxu0
  %v196 = vmax.f32 %v134, 0.0
  %v197 = vmax.f32 %v137, 0.0
  %v198 = vmax.f32 %v142, 0.0
  %v199 = vmax.f32 %v145, 0.0
  %v200 = vmax.f32 %v150, 0.0
  %v201 = vmax.f32 %v153, 0.0
  %v202 = vmax.f32 %v158, 0.0
  %v203 = vmax.f32 %v161, 0.0
  %v204 = vmax.f32 %v166, 0.0
  %v205 = vmax.f32 %v169, 0.0
  %v206 = vmax.f32 %v174, 0.0
  %v207 = vmax.f32 %v177, 0.0
  %v208 = vmax.f32 %v182, 0.0
  %v209 = vmax.f32 %v185, 0.0
  %v210 = vmax.f32 %v190, 0.0
  %v211 = vmax.f32 %v193, 0.0
  %v212 = vpack.c.bf16 %v197, %v196
  %v213 = vpack.c.bf16 %v199, %v198
  %v214 = vpack.c.bf16 %v201, %v200
  %v215 = vpack.c.bf16 %v203, %v202
  %v216 = vpack.c.bf16 %v205, %v204
  %v217 = vpack.c.bf16 %v207, %v206
  %v218 = vpack.c.bf16 %v209, %v208
  %v219 = vpack.c.bf16 %v211, %v210
  %v220 = vld [vmem:[%s3] sm:$0xf]
  %v221 = vld [vmem:[%s3 + $0x4] sm:$0xf]
  %v222 = vld [vmem:[%s3 + $0x8] sm:$0xf]
  %v223 = vld [vmem:[%s3 + $0xc] sm:$0xf]
  %v224 = vld [vmem:[%s3 + $0x10] sm:$0xf]
  %v225 = vld [vmem:[%s3 + $0x14] sm:$0xf]
  %v226 = vld [vmem:[%s3 + $0x18] sm:$0xf]
  %v227 = vld [vmem:[%s3 + $0x1c] sm:$0xf]
  %v236 = vunpack.c.l.b16 %v220
  %v237 = vunpack.c.l.b16 %v221
  %v238 = vunpack.c.l.b16 %v222
  %v239 = vunpack.c.l.b16 %v223
  %v240 = vunpack.c.l.b16 %v224
  %v241 = vunpack.c.l.b16 %v225
  %v242 = vunpack.c.l.b16 %v226
  %v243 = vunpack.c.l.b16 %v227
  %v244 = vpack.c.b16 %v237, %v236
  %v245 = vpack.c.b16 %v239, %v238
  %v246 = vpack.c.b16 %v241, %v240
  %v247 = vpack.c.b16 %v243, %v242
  %vm252 = vcmask 523264
  %v254 = vsel %vm252, %v212, 0
  %v257 = vsel %vm252, %v213, 0
  %v260 = vsel %vm252, %v214, 0
  %v263 = vsel %vm252, %v215, 0
  %v266 = vsel %vm252, %v216, 0
  %v269 = vsel %vm252, %v217, 0
  %v272 = vsel %vm252, %v218, 0
  %v275 = vsel %vm252, %v219, 0
  %277 = vmatprep.subr.bf16.mxu0 0
  %278 = vmatpush1.bf16.msra.mxu0 0
  %279 = vmatprep.subr.bf16.mxu0 0
  %280 = vmatpush1.bf16.msra.mxu0 0
  %281 = vmatprep.subr.bf16.mxu0 0
  %282 = vmatpush1.bf16.msra.mxu0 0
  %283 = vmatprep.subr.bf16.mxu0 0
  %284 = vmatpush1.bf16.msra.mxu0 0
  %285 = vmatprep.subr.bf16.mxu0 0
  %286 = vmatpush1.bf16.msra.mxu0 %v247
  %287 = vmatprep.subr.bf16.mxu0 0
  %288 = vmatpush1.bf16.msra.mxu0 %v246
  %289 = vmatprep.subr.bf16.mxu0 0
  %290 = vmatpush1.bf16.msra.mxu0 %v245
  %291 = vmatprep.subr.bf16.mxu0 0
  %292 = vmatpush1.bf16.msra.mxu0 %v244
  %293 = vmatprep.subr.bf16.mxu0 0
  %294 = vmatpush2.bf16.msra.mxu0 0
  %295 = vmatprep.subr.bf16.mxu0 0
  %296 = vmatpush2.bf16.msra.mxu0 0
  %297 = vmatprep.subr.bf16.mxu0 0
  %298 = vmatpush2.bf16.msra.mxu0 0
  %299 = vmatprep.subr.bf16.mxu0 0
  %300 = vmatpush2.bf16.msra.mxu0 0
  %301 = vmatprep.subr.bf16.mxu0 0
  %302 = vmatpush2.bf16.msra.mxu0 0
  %303 = vmatprep.subr.bf16.mxu0 0
  %304 = vmatpush2.bf16.msra.mxu0 0
  %305 = vmatprep.subr.bf16.mxu0 0
  %306 = vmatpush2.bf16.msra.mxu0 0
  %307 = vmatprep.subr.bf16.mxu0 0
  %308 = vmatpush2.bf16.msra.mxu0 0
  %309 = vmatprep.mubr.bf16.mxu0 0
  %310 = vmatmul.mubr.bf16.gmra.mxu0 %v254
  %v311 = vpop.f32.mrf.mxu0
  %v312 = vadd.f32 0.0, %v311
  %v313 = vpop.f32.mrf.mxu0
  %v314 = vpop.f32.mrf.mxu0
  %v315 = vadd.f32 0.0, %v314
  %v316 = vpop.f32.mrf.mxu0
  %317 = vmatprep.mubr.bf16.mxu0 0
  %318 = vmatmul.mubr.bf16.gmra.mxu0 %v257
  %v319 = vpop.f32.mrf.mxu0
  %v320 = vadd.f32 0.0, %v319
  %v321 = vpop.f32.mrf.mxu0
  %v322 = vpop.f32.mrf.mxu0
  %v323 = vadd.f32 0.0, %v322
  %v324 = vpop.f32.mrf.mxu0
  %325 = vmatprep.mubr.bf16.mxu0 0
  %326 = vmatmul.mubr.bf16.gmra.mxu0 %v260
  %v327 = vpop.f32.mrf.mxu0
  %v328 = vadd.f32 0.0, %v327
  %v329 = vpop.f32.mrf.mxu0
  %v330 = vpop.f32.mrf.mxu0
  %v331 = vadd.f32 0.0, %v330
  %v332 = vpop.f32.mrf.mxu0
  %333 = vmatprep.mubr.bf16.mxu0 0
  %334 = vmatmul.mubr.bf16.gmra.mxu0 %v263
  %v335 = vpop.f32.mrf.mxu0
  %v336 = vadd.f32 0.0, %v335
  %v337 = vpop.f32.mrf.mxu0
  %v338 = vpop.f32.mrf.mxu0
  %v339 = vadd.f32 0.0, %v338
  %v340 = vpop.f32.mrf.mxu0
  %341 = vmatprep.mubr.bf16.mxu0 0
  %342 = vmatmul.mubr.bf16.gmra.mxu0 %v266
  %v343 = vpop.f32.mrf.mxu0
  %v344 = vadd.f32 0.0, %v343
  %v345 = vpop.f32.mrf.mxu0
  %v346 = vpop.f32.mrf.mxu0
  %v347 = vadd.f32 0.0, %v346
  %v348 = vpop.f32.mrf.mxu0
  %349 = vmatprep.mubr.bf16.mxu0 0
  %350 = vmatmul.mubr.bf16.gmra.mxu0 %v269
  %v351 = vpop.f32.mrf.mxu0
  %v352 = vadd.f32 0.0, %v351
  %v353 = vpop.f32.mrf.mxu0
  %v354 = vpop.f32.mrf.mxu0
  %v355 = vadd.f32 0.0, %v354
  %v356 = vpop.f32.mrf.mxu0
  %357 = vmatprep.mubr.bf16.mxu0 0
  %358 = vmatmul.mubr.bf16.gmra.mxu0 %v272
  %v359 = vpop.f32.mrf.mxu0
  %v360 = vadd.f32 0.0, %v359
  %v361 = vpop.f32.mrf.mxu0
  %v362 = vpop.f32.mrf.mxu0
  %v363 = vadd.f32 0.0, %v362
  %v364 = vpop.f32.mrf.mxu0
  %365 = vmatprep.mubr.bf16.mxu0 0
  %366 = vmatmul.mubr.bf16.gmra.mxu0 %v275
  %v367 = vpop.f32.mrf.mxu0
  %v368 = vadd.f32 0.0, %v367
  %v369 = vpop.f32.mrf.mxu0
  %v370 = vpop.f32.mrf.mxu0
  %v371 = vadd.f32 0.0, %v370
  %v372 = vpop.f32.mrf.mxu0
  %373 = vdwg.mxu0
  %v374 = vmax.f32 %v312, 0.0
  %v375 = vmax.f32 %v315, 0.0
  %v376 = vmax.f32 %v320, 0.0
  %v377 = vmax.f32 %v323, 0.0
  %v378 = vmax.f32 %v328, 0.0
  %v379 = vmax.f32 %v331, 0.0
  %v380 = vmax.f32 %v336, 0.0
  %v381 = vmax.f32 %v339, 0.0
  %v382 = vmax.f32 %v344, 0.0
  %v383 = vmax.f32 %v347, 0.0
  %v384 = vmax.f32 %v352, 0.0
  %v385 = vmax.f32 %v355, 0.0
  %v386 = vmax.f32 %v360, 0.0
  %v387 = vmax.f32 %v363, 0.0
  %v388 = vmax.f32 %v368, 0.0
  %v389 = vmax.f32 %v371, 0.0
  %v390 = vpack.c.bf16 %v375, %v374
  %v391 = vpack.c.bf16 %v377, %v376
  %v392 = vpack.c.bf16 %v379, %v378
  %v393 = vpack.c.bf16 %v381, %v380
  %v394 = vpack.c.bf16 %v383, %v382
  %v395 = vpack.c.bf16 %v385, %v384
  %v396 = vpack.c.bf16 %v387, %v386
  %v397 = vpack.c.bf16 %v389, %v388
  %v398 = vld [vmem:[%s4] sm:$0xf]
  %v399 = vld [vmem:[%s4 + $0x4] sm:$0xf]
  %v400 = vld [vmem:[%s4 + $0x8] sm:$0xf]
  %v401 = vld [vmem:[%s4 + $0xc] sm:$0xf]
  %v402 = vld [vmem:[%s4 + $0x10] sm:$0xf]
  %v403 = vld [vmem:[%s4 + $0x14] sm:$0xf]
  %v404 = vld [vmem:[%s4 + $0x18] sm:$0xf]
  %v405 = vld [vmem:[%s4 + $0x1c] sm:$0xf]
  %v414 = vunpack.c.l.b16 %v398
  %v415 = vunpack.c.l.b16 %v399
  %v416 = vunpack.c.l.b16 %v400
  %v417 = vunpack.c.l.b16 %v401
  %v418 = vunpack.c.l.b16 %v402
  %v419 = vunpack.c.l.b16 %v403
  %v420 = vunpack.c.l.b16 %v404
  %v421 = vunpack.c.l.b16 %v405
  %v422 = vpack.c.b16 %v415, %v414
  %v423 = vpack.c.b16 %v417, %v416
  %v424 = vpack.c.b16 %v419, %v418
  %v425 = vpack.c.b16 %v421, %v420
  %v431 = vsel %vm252, %v390, 0
  %v434 = vsel %vm252, %v391, 0
  %v437 = vsel %vm252, %v392, 0
  %v440 = vsel %vm252, %v393, 0
  %v443 = vsel %vm252, %v394, 0
  %v446 = vsel %vm252, %v395, 0
  %v449 = vsel %vm252, %v396, 0
  %v452 = vsel %vm252, %v397, 0
  %454 = vmatprep.subr.bf16.mxu0 0
  %455 = vmatpush1.bf16.msra.mxu0 0
  %456 = vmatprep.subr.bf16.mxu0 0
  %457 = vmatpush1.bf16.msra.mxu0 0
  %458 = vmatprep.subr.bf16.mxu0 0
  %459 = vmatpush1.bf16.msra.mxu0 0
  %460 = vmatprep.subr.bf16.mxu0 0
  %461 = vmatpush1.bf16.msra.mxu0 0
  %462 = vmatprep.subr.bf16.mxu0 0
  %463 = vmatpush1.bf16.msra.mxu0 %v425
  %464 = vmatprep.subr.bf16.mxu0 0
  %465 = vmatpush1.bf16.msra.mxu0 %v424
  %466 = vmatprep.subr.bf16.mxu0 0
  %467 = vmatpush1.bf16.msra.mxu0 %v423
  %468 = vmatprep.subr.bf16.mxu0 0
  %469 = vmatpush1.bf16.msra.mxu0 %v422
  %470 = vmatprep.subr.bf16.mxu0 0
  %471 = vmatpush2.bf16.msra.mxu0 0
  %472 = vmatprep.subr.bf16.mxu0 0
  %473 = vmatpush2.bf16.msra.mxu0 0
  %474 = vmatprep.subr.bf16.mxu0 0
  %475 = vmatpush2.bf16.msra.mxu0 0
  %476 = vmatprep.subr.bf16.mxu0 0
  %477 = vmatpush2.bf16.msra.mxu0 0
  %478 = vmatprep.subr.bf16.mxu0 0
  %479 = vmatpush2.bf16.msra.mxu0 0
  %480 = vmatprep.subr.bf16.mxu0 0
  %481 = vmatpush2.bf16.msra.mxu0 0
  %482 = vmatprep.subr.bf16.mxu0 0
  %483 = vmatpush2.bf16.msra.mxu0 0
  %484 = vmatprep.subr.bf16.mxu0 0
  %485 = vmatpush2.bf16.msra.mxu0 0
  %486 = vmatprep.mubr.bf16.mxu0 0
  %487 = vmatmul.mubr.bf16.gmra.mxu0 %v431
  %v488 = vpop.f32.mrf.mxu0
  %v489 = vadd.f32 0.0, %v488
  %v490 = vpop.f32.mrf.mxu0
  %v491 = vpop.f32.mrf.mxu0
  %v492 = vadd.f32 0.0, %v491
  %v493 = vpop.f32.mrf.mxu0
  %494 = vmatprep.mubr.bf16.mxu0 0
  %495 = vmatmul.mubr.bf16.gmra.mxu0 %v434
  %v496 = vpop.f32.mrf.mxu0
  %v497 = vadd.f32 0.0, %v496
  %v498 = vpop.f32.mrf.mxu0
  %v499 = vpop.f32.mrf.mxu0
  %v500 = vadd.f32 0.0, %v499
  %v501 = vpop.f32.mrf.mxu0
  %502 = vmatprep.mubr.bf16.mxu0 0
  %503 = vmatmul.mubr.bf16.gmra.mxu0 %v437
  %v504 = vpop.f32.mrf.mxu0
  %v505 = vadd.f32 0.0, %v504
  %v506 = vpop.f32.mrf.mxu0
  %v507 = vpop.f32.mrf.mxu0
  %v508 = vadd.f32 0.0, %v507
  %v509 = vpop.f32.mrf.mxu0
  %510 = vmatprep.mubr.bf16.mxu0 0
  %511 = vmatmul.mubr.bf16.gmra.mxu0 %v440
  %v512 = vpop.f32.mrf.mxu0
  %v513 = vadd.f32 0.0, %v512
  %v514 = vpop.f32.mrf.mxu0
  %v515 = vpop.f32.mrf.mxu0
  %v516 = vadd.f32 0.0, %v515
  %v517 = vpop.f32.mrf.mxu0
  %518 = vmatprep.mubr.bf16.mxu0 0
  %519 = vmatmul.mubr.bf16.gmra.mxu0 %v443
  %v520 = vpop.f32.mrf.mxu0
  %v521 = vadd.f32 0.0, %v520
  %v522 = vpop.f32.mrf.mxu0
  %v523 = vpop.f32.mrf.mxu0
  %v524 = vadd.f32 0.0, %v523
  %v525 = vpop.f32.mrf.mxu0
  %526 = vmatprep.mubr.bf16.mxu0 0
  %527 = vmatmul.mubr.bf16.gmra.mxu0 %v446
  %v528 = vpop.f32.mrf.mxu0
  %v529 = vadd.f32 0.0, %v528
  %v530 = vpop.f32.mrf.mxu0
  %v531 = vpop.f32.mrf.mxu0
  %v532 = vadd.f32 0.0, %v531
  %v533 = vpop.f32.mrf.mxu0
  %534 = vmatprep.mubr.bf16.mxu0 0
  %535 = vmatmul.mubr.bf16.gmra.mxu0 %v449
  %v536 = vpop.f32.mrf.mxu0
  %v537 = vadd.f32 0.0, %v536
  %v538 = vpop.f32.mrf.mxu0
  %v539 = vpop.f32.mrf.mxu0
  %v540 = vadd.f32 0.0, %v539
  %v541 = vpop.f32.mrf.mxu0
  %542 = vmatprep.mubr.bf16.mxu0 0
  %543 = vmatmul.mubr.bf16.gmra.mxu0 %v452
  %v544 = vpop.f32.mrf.mxu0
  %v545 = vadd.f32 0.0, %v544
  %v546 = vpop.f32.mrf.mxu0
  %v547 = vpop.f32.mrf.mxu0
  %v548 = vadd.f32 0.0, %v547
  %v549 = vpop.f32.mrf.mxu0
  %550 = vdwg.mxu0
  %v551 = vmax.f32 %v489, 0.0
  %v552 = vmax.f32 %v492, 0.0
  %v553 = vmax.f32 %v497, 0.0
  %v554 = vmax.f32 %v500, 0.0
  %v555 = vmax.f32 %v505, 0.0
  %v556 = vmax.f32 %v508, 0.0
  %v557 = vmax.f32 %v513, 0.0
  %v558 = vmax.f32 %v516, 0.0
  %v559 = vmax.f32 %v521, 0.0
  %v560 = vmax.f32 %v524, 0.0
  %v561 = vmax.f32 %v529, 0.0
  %v562 = vmax.f32 %v532, 0.0
  %v563 = vmax.f32 %v537, 0.0
  %v564 = vmax.f32 %v540, 0.0
  %v565 = vmax.f32 %v545, 0.0
  %v566 = vmax.f32 %v548, 0.0
  %v567 = vadd.f32 %v551, %v196
  %v568 = vadd.f32 %v552, %v197
  %v569 = vadd.f32 %v553, %v198
  %v570 = vadd.f32 %v554, %v199
  %v571 = vadd.f32 %v555, %v200
  %v572 = vadd.f32 %v556, %v201
  %v573 = vadd.f32 %v557, %v202
  %v574 = vadd.f32 %v558, %v203
  %v575 = vadd.f32 %v559, %v204
  %v576 = vadd.f32 %v560, %v205
  %v577 = vadd.f32 %v561, %v206
  %v578 = vadd.f32 %v562, %v207
  %v579 = vadd.f32 %v563, %v208
  %v580 = vadd.f32 %v564, %v209
  %v581 = vadd.f32 %v565, %v210
  %v582 = vadd.f32 %v566, %v211
  %v583 = vpack.c.bf16 %v568, %v567
  %v584 = vpack.c.bf16 %v570, %v569
  %v585 = vpack.c.bf16 %v572, %v571
  %v586 = vpack.c.bf16 %v574, %v573
  %v587 = vpack.c.bf16 %v576, %v575
  %v588 = vpack.c.bf16 %v578, %v577
  %v589 = vpack.c.bf16 %v580, %v579
  %v590 = vpack.c.bf16 %v582, %v581
  %s591 = scalar_lea.vmem %s3, 32
  %v592 = vld [vmem:[%s591] sm:$0xf]
  %v593 = vld [vmem:[%s591 + $0x4] sm:$0xf]
  %v594 = vld [vmem:[%s591 + $0x8] sm:$0xf]
  %v595 = vld [vmem:[%s591 + $0xc] sm:$0xf]
  %v596 = vld [vmem:[%s591 + $0x10] sm:$0xf]
  %v597 = vld [vmem:[%s591 + $0x14] sm:$0xf]
  %v598 = vld [vmem:[%s591 + $0x18] sm:$0xf]
  %v599 = vld [vmem:[%s591 + $0x1c] sm:$0xf]
  %v608 = vunpack.c.l.b16 %v592
  %v609 = vunpack.c.l.b16 %v593
  %v610 = vunpack.c.l.b16 %v594
  %v611 = vunpack.c.l.b16 %v595
  %v612 = vunpack.c.l.b16 %v596
  %v613 = vunpack.c.l.b16 %v597
  %v614 = vunpack.c.l.b16 %v598
  %v615 = vunpack.c.l.b16 %v599
  %v616 = vpack.c.b16 %v609, %v608
  %v617 = vpack.c.b16 %v611, %v610
  %v618 = vpack.c.b16 %v613, %v612
  %v619 = vpack.c.b16 %v615, %v614
  %v625 = vsel %vm252, %v583, 0
  %v628 = vsel %vm252, %v584, 0
  %v631 = vsel %vm252, %v585, 0
  %v634 = vsel %vm252, %v586, 0
  %v637 = vsel %vm252, %v587, 0
  %v640 = vsel %vm252, %v588, 0
  %v643 = vsel %vm252, %v589, 0
  %v646 = vsel %vm252, %v590, 0
  %648 = vmatprep.subr.bf16.mxu0 0
  %649 = vmatpush1.bf16.msra.mxu0 0
  %650 = vmatprep.subr.bf16.mxu0 0
  %651 = vmatpush1.bf16.msra.mxu0 0
  %652 = vmatprep.subr.bf16.mxu0 0
  %653 = vmatpush1.bf16.msra.mxu0 0
  %654 = vmatprep.subr.bf16.mxu0 0
  %655 = vmatpush1.bf16.msra.mxu0 0
  %656 = vmatprep.subr.bf16.mxu0 0
  %657 = vmatpush1.bf16.msra.mxu0 %v619
  %658 = vmatprep.subr.bf16.mxu0 0
  %659 = vmatpush1.bf16.msra.mxu0 %v618
  %660 = vmatprep.subr.bf16.mxu0 0
  %661 = vmatpush1.bf16.msra.mxu0 %v617
  %662 = vmatprep.subr.bf16.mxu0 0
  %663 = vmatpush1.bf16.msra.mxu0 %v616
  %664 = vmatprep.subr.bf16.mxu0 0
  %665 = vmatpush2.bf16.msra.mxu0 0
  %666 = vmatprep.subr.bf16.mxu0 0
  %667 = vmatpush2.bf16.msra.mxu0 0
  %668 = vmatprep.subr.bf16.mxu0 0
  %669 = vmatpush2.bf16.msra.mxu0 0
  %670 = vmatprep.subr.bf16.mxu0 0
  %671 = vmatpush2.bf16.msra.mxu0 0
  %672 = vmatprep.subr.bf16.mxu0 0
  %673 = vmatpush2.bf16.msra.mxu0 0
  %674 = vmatprep.subr.bf16.mxu0 0
  %675 = vmatpush2.bf16.msra.mxu0 0
  %676 = vmatprep.subr.bf16.mxu0 0
  %677 = vmatpush2.bf16.msra.mxu0 0
  %678 = vmatprep.subr.bf16.mxu0 0
  %679 = vmatpush2.bf16.msra.mxu0 0
  %680 = vmatprep.mubr.bf16.mxu0 0
  %681 = vmatmul.mubr.bf16.gmra.mxu0 %v625
  %v682 = vpop.f32.mrf.mxu0
  %v683 = vadd.f32 0.0, %v682
  %v684 = vpop.f32.mrf.mxu0
  %v685 = vpop.f32.mrf.mxu0
  %v686 = vadd.f32 0.0, %v685
  %v687 = vpop.f32.mrf.mxu0
  %688 = vmatprep.mubr.bf16.mxu0 0
  %689 = vmatmul.mubr.bf16.gmra.mxu0 %v628
  %v690 = vpop.f32.mrf.mxu0
  %v691 = vadd.f32 0.0, %v690
  %v692 = vpop.f32.mrf.mxu0
  %v693 = vpop.f32.mrf.mxu0
  %v694 = vadd.f32 0.0, %v693
  %v695 = vpop.f32.mrf.mxu0
  %696 = vmatprep.mubr.bf16.mxu0 0
  %697 = vmatmul.mubr.bf16.gmra.mxu0 %v631
  %v698 = vpop.f32.mrf.mxu0
  %v699 = vadd.f32 0.0, %v698
  %v700 = vpop.f32.mrf.mxu0
  %v701 = vpop.f32.mrf.mxu0
  %v702 = vadd.f32 0.0, %v701
  %v703 = vpop.f32.mrf.mxu0
  %704 = vmatprep.mubr.bf16.mxu0 0
  %705 = vmatmul.mubr.bf16.gmra.mxu0 %v634
  %v706 = vpop.f32.mrf.mxu0
  %v707 = vadd.f32 0.0, %v706
  %v708 = vpop.f32.mrf.mxu0
  %v709 = vpop.f32.mrf.mxu0
  %v710 = vadd.f32 0.0, %v709
  %v711 = vpop.f32.mrf.mxu0
  %712 = vmatprep.mubr.bf16.mxu0 0
  %713 = vmatmul.mubr.bf16.gmra.mxu0 %v637
  %v714 = vpop.f32.mrf.mxu0
  %v715 = vadd.f32 0.0, %v714
  %v716 = vpop.f32.mrf.mxu0
  %v717 = vpop.f32.mrf.mxu0
  %v718 = vadd.f32 0.0, %v717
  %v719 = vpop.f32.mrf.mxu0
  %720 = vmatprep.mubr.bf16.mxu0 0
  %721 = vmatmul.mubr.bf16.gmra.mxu0 %v640
  %v722 = vpop.f32.mrf.mxu0
  %v723 = vadd.f32 0.0, %v722
  %v724 = vpop.f32.mrf.mxu0
  %v725 = vpop.f32.mrf.mxu0
  %v726 = vadd.f32 0.0, %v725
  %v727 = vpop.f32.mrf.mxu0
  %728 = vmatprep.mubr.bf16.mxu0 0
  %729 = vmatmul.mubr.bf16.gmra.mxu0 %v643
  %v730 = vpop.f32.mrf.mxu0
  %v731 = vadd.f32 0.0, %v730
  %v732 = vpop.f32.mrf.mxu0
  %v733 = vpop.f32.mrf.mxu0
  %v734 = vadd.f32 0.0, %v733
  %v735 = vpop.f32.mrf.mxu0
  %736 = vmatprep.mubr.bf16.mxu0 0
  %737 = vmatmul.mubr.bf16.gmra.mxu0 %v646
  %v738 = vpop.f32.mrf.mxu0
  %v739 = vadd.f32 0.0, %v738
  %v740 = vpop.f32.mrf.mxu0
  %v741 = vpop.f32.mrf.mxu0
  %v742 = vadd.f32 0.0, %v741
  %v743 = vpop.f32.mrf.mxu0
  %744 = vdwg.mxu0
  %v745 = vmax.f32 %v683, 0.0
  %v746 = vmax.f32 %v686, 0.0
  %v747 = vmax.f32 %v691, 0.0
  %v748 = vmax.f32 %v694, 0.0
  %v749 = vmax.f32 %v699, 0.0
  %v750 = vmax.f32 %v702, 0.0
  %v751 = vmax.f32 %v707, 0.0
  %v752 = vmax.f32 %v710, 0.0
  %v753 = vmax.f32 %v715, 0.0
  %v754 = vmax.f32 %v718, 0.0
  %v755 = vmax.f32 %v723, 0.0
  %v756 = vmax.f32 %v726, 0.0
  %v757 = vmax.f32 %v731, 0.0
  %v758 = vmax.f32 %v734, 0.0
  %v759 = vmax.f32 %v739, 0.0
  %v760 = vmax.f32 %v742, 0.0
  %v761 = vpack.c.bf16 %v746, %v745
  %v762 = vpack.c.bf16 %v748, %v747
  %v763 = vpack.c.bf16 %v750, %v749
  %v764 = vpack.c.bf16 %v752, %v751
  %v765 = vpack.c.bf16 %v754, %v753
  %v766 = vpack.c.bf16 %v756, %v755
  %v767 = vpack.c.bf16 %v758, %v757
  %v768 = vpack.c.bf16 %v760, %v759
  %s769 = scalar_lea.vmem %s4, 32
  %v770 = vld [vmem:[%s769] sm:$0xf]
  %v771 = vld [vmem:[%s769 + $0x4] sm:$0xf]
  %v772 = vld [vmem:[%s769 + $0x8] sm:$0xf]
  %v773 = vld [vmem:[%s769 + $0xc] sm:$0xf]
  %v774 = vld [vmem:[%s769 + $0x10] sm:$0xf]
  %v775 = vld [vmem:[%s769 + $0x14] sm:$0xf]
  %v776 = vld [vmem:[%s769 + $0x18] sm:$0xf]
  %v777 = vld [vmem:[%s769 + $0x1c] sm:$0xf]
  %v786 = vunpack.c.l.b16 %v770
  %v787 = vunpack.c.l.b16 %v771
  %v788 = vunpack.c.l.b16 %v772
  %v789 = vunpack.c.l.b16 %v773
  %v790 = vunpack.c.l.b16 %v774
  %v791 = vunpack.c.l.b16 %v775
  %v792 = vunpack.c.l.b16 %v776
  %v793 = vunpack.c.l.b16 %v777
  %v794 = vpack.c.b16 %v787, %v786
  %v795 = vpack.c.b16 %v789, %v788
  %v796 = vpack.c.b16 %v791, %v790
  %v797 = vpack.c.b16 %v793, %v792
  %v803 = vsel %vm252, %v761, 0
  %v806 = vsel %vm252, %v762, 0
  %v809 = vsel %vm252, %v763, 0
  %v812 = vsel %vm252, %v764, 0
  %v815 = vsel %vm252, %v765, 0
  %v818 = vsel %vm252, %v766, 0
  %v821 = vsel %vm252, %v767, 0
  %v824 = vsel %vm252, %v768, 0
  %826 = vmatprep.subr.bf16.mxu0 0
  %827 = vmatpush1.bf16.msra.mxu0 0
  %828 = vmatprep.subr.bf16.mxu0 0
  %829 = vmatpush1.bf16.msra.mxu0 0
  %830 = vmatprep.subr.bf16.mxu0 0
  %831 = vmatpush1.bf16.msra.mxu0 0
  %832 = vmatprep.subr.bf16.mxu0 0
  %833 = vmatpush1.bf16.msra.mxu0 0
  %834 = vmatprep.subr.bf16.mxu0 0
  %835 = vmatpush1.bf16.msra.mxu0 %v797
  %836 = vmatprep.subr.bf16.mxu0 0
  %837 = vmatpush1.bf16.msra.mxu0 %v796
  %838 = vmatprep.subr.bf16.mxu0 0
  %839 = vmatpush1.bf16.msra.mxu0 %v795
  %840 = vmatprep.subr.bf16.mxu0 0
  %841 = vmatpush1.bf16.msra.mxu0 %v794
  %842 = vmatprep.subr.bf16.mxu0 0
  %843 = vmatpush2.bf16.msra.mxu0 0
  %844 = vmatprep.subr.bf16.mxu0 0
  %845 = vmatpush2.bf16.msra.mxu0 0
  %846 = vmatprep.subr.bf16.mxu0 0
  %847 = vmatpush2.bf16.msra.mxu0 0
  %848 = vmatprep.subr.bf16.mxu0 0
  %849 = vmatpush2.bf16.msra.mxu0 0
  %850 = vmatprep.subr.bf16.mxu0 0
  %851 = vmatpush2.bf16.msra.mxu0 0
  %852 = vmatprep.subr.bf16.mxu0 0
  %853 = vmatpush2.bf16.msra.mxu0 0
  %854 = vmatprep.subr.bf16.mxu0 0
  %855 = vmatpush2.bf16.msra.mxu0 0
  %856 = vmatprep.subr.bf16.mxu0 0
  %857 = vmatpush2.bf16.msra.mxu0 0
  %858 = vmatprep.mubr.bf16.mxu0 0
  %859 = vmatmul.mubr.bf16.gmra.mxu0 %v803
  %v860 = vpop.f32.mrf.mxu0
  %v861 = vadd.f32 0.0, %v860
  %v862 = vpop.f32.mrf.mxu0
  %v863 = vpop.f32.mrf.mxu0
  %v864 = vadd.f32 0.0, %v863
  %v865 = vpop.f32.mrf.mxu0
  %866 = vmatprep.mubr.bf16.mxu0 0
  %867 = vmatmul.mubr.bf16.gmra.mxu0 %v806
  %v868 = vpop.f32.mrf.mxu0
  %v869 = vadd.f32 0.0, %v868
  %v870 = vpop.f32.mrf.mxu0
  %v871 = vpop.f32.mrf.mxu0
  %v872 = vadd.f32 0.0, %v871
  %v873 = vpop.f32.mrf.mxu0
  %874 = vmatprep.mubr.bf16.mxu0 0
  %875 = vmatmul.mubr.bf16.gmra.mxu0 %v809
  %v876 = vpop.f32.mrf.mxu0
  %v877 = vadd.f32 0.0, %v876
  %v878 = vpop.f32.mrf.mxu0
  %v879 = vpop.f32.mrf.mxu0
  %v880 = vadd.f32 0.0, %v879
  %v881 = vpop.f32.mrf.mxu0
  %882 = vmatprep.mubr.bf16.mxu0 0
  %883 = vmatmul.mubr.bf16.gmra.mxu0 %v812
  %v884 = vpop.f32.mrf.mxu0
  %v885 = vadd.f32 0.0, %v884
  %v886 = vpop.f32.mrf.mxu0
  %v887 = vpop.f32.mrf.mxu0
  %v888 = vadd.f32 0.0, %v887
  %v889 = vpop.f32.mrf.mxu0
  %890 = vmatprep.mubr.bf16.mxu0 0
  %891 = vmatmul.mubr.bf16.gmra.mxu0 %v815
  %v892 = vpop.f32.mrf.mxu0
  %v893 = vadd.f32 0.0, %v892
  %v894 = vpop.f32.mrf.mxu0
  %v895 = vpop.f32.mrf.mxu0
  %v896 = vadd.f32 0.0, %v895
  %v897 = vpop.f32.mrf.mxu0
  %898 = vmatprep.mubr.bf16.mxu0 0
  %899 = vmatmul.mubr.bf16.gmra.mxu0 %v818
  %v900 = vpop.f32.mrf.mxu0
  %v901 = vadd.f32 0.0, %v900
  %v902 = vpop.f32.mrf.mxu0
  %v903 = vpop.f32.mrf.mxu0
  %v904 = vadd.f32 0.0, %v903
  %v905 = vpop.f32.mrf.mxu0
  %906 = vmatprep.mubr.bf16.mxu0 0
  %907 = vmatmul.mubr.bf16.gmra.mxu0 %v821
  %v908 = vpop.f32.mrf.mxu0
  %v909 = vadd.f32 0.0, %v908
  %v910 = vpop.f32.mrf.mxu0
  %v911 = vpop.f32.mrf.mxu0
  %v912 = vadd.f32 0.0, %v911
  %v913 = vpop.f32.mrf.mxu0
  %914 = vmatprep.mubr.bf16.mxu0 0
  %915 = vmatmul.mubr.bf16.gmra.mxu0 %v824
  %v916 = vpop.f32.mrf.mxu0
  %v917 = vadd.f32 0.0, %v916
  %v918 = vpop.f32.mrf.mxu0
  %v919 = vpop.f32.mrf.mxu0
  %v920 = vadd.f32 0.0, %v919
  %v921 = vpop.f32.mrf.mxu0
  %922 = vdwg.mxu0
  %v923 = vmax.f32 %v861, 0.0
  %v924 = vmax.f32 %v864, 0.0
  %v925 = vmax.f32 %v869, 0.0
  %v926 = vmax.f32 %v872, 0.0
  %v927 = vmax.f32 %v877, 0.0
  %v928 = vmax.f32 %v880, 0.0
  %v929 = vmax.f32 %v885, 0.0
  %v930 = vmax.f32 %v888, 0.0
  %v931 = vmax.f32 %v893, 0.0
  %v932 = vmax.f32 %v896, 0.0
  %v933 = vmax.f32 %v901, 0.0
  %v934 = vmax.f32 %v904, 0.0
  %v935 = vmax.f32 %v909, 0.0
  %v936 = vmax.f32 %v912, 0.0
  %v937 = vmax.f32 %v917, 0.0
  %v938 = vmax.f32 %v920, 0.0
  %v939 = vadd.f32 %v923, %v567
  %v940 = vadd.f32 %v924, %v568
  %v941 = vadd.f32 %v925, %v569
  %v942 = vadd.f32 %v926, %v570
  %v943 = vadd.f32 %v927, %v571
  %v944 = vadd.f32 %v928, %v572
  %v945 = vadd.f32 %v929, %v573
  %v946 = vadd.f32 %v930, %v574
  %v947 = vadd.f32 %v931, %v575
  %v948 = vadd.f32 %v932, %v576
  %v949 = vadd.f32 %v933, %v577
  %v950 = vadd.f32 %v934, %v578
  %v951 = vadd.f32 %v935, %v579
  %v952 = vadd.f32 %v936, %v580
  %v953 = vadd.f32 %v937, %v581
  %v954 = vadd.f32 %v938, %v582
  %v955 = vpack.c.bf16 %v940, %v939
  %v956 = vpack.c.bf16 %v942, %v941
  %v957 = vpack.c.bf16 %v944, %v943
  %v958 = vpack.c.bf16 %v946, %v945
  %v959 = vpack.c.bf16 %v948, %v947
  %v960 = vpack.c.bf16 %v950, %v949
  %v961 = vpack.c.bf16 %v952, %v951
  %v962 = vpack.c.bf16 %v954, %v953
  %v963 = vld [vmem:[%s5] sm:$0xf]
  %v964 = vld [vmem:[%s5 + $0x4] sm:$0xf]
  %v965 = vld [vmem:[%s5 + $0x8] sm:$0xf]
  %v966 = vld [vmem:[%s5 + $0xc] sm:$0xf]
  %v967 = vld [vmem:[%s5 + $0x10] sm:$0xf]
  %v968 = vld [vmem:[%s5 + $0x14] sm:$0xf]
  %v969 = vld [vmem:[%s5 + $0x18] sm:$0xf]
  %v970 = vld [vmem:[%s5 + $0x1c] sm:$0xf]
  %v971 = vld [vmem:[%s6] sm:$0x1]
  %v973 = vlaneseq
  %v974 = vshrl.u32 %v973, 7
  %v975 = vsub.s32 0, %v974
  %v976 = vrot.slane %v971, %v975
  %v986 = vunpack.c.l.b16 %v963
  %v987 = vunpack.c.l.b16 %v964
  %v988 = vunpack.c.l.b16 %v965
  %v989 = vunpack.c.l.b16 %v966
  %v990 = vunpack.c.l.b16 %v967
  %v991 = vunpack.c.l.b16 %v968
  %v992 = vunpack.c.l.b16 %v969
  %v993 = vunpack.c.l.b16 %v970
  %v994 = vpack.c.b16 %v987, %v986
  %v995 = vpack.c.b16 %v989, %v988
  %v996 = vpack.c.b16 %v991, %v990
  %v997 = vpack.c.b16 %v993, %v992
  %v1003 = vsel %vm252, %v955, 0
  %v1006 = vsel %vm252, %v956, 0
  %v1009 = vsel %vm252, %v957, 0
  %v1012 = vsel %vm252, %v958, 0
  %v1015 = vsel %vm252, %v959, 0
  %v1018 = vsel %vm252, %v960, 0
  %v1021 = vsel %vm252, %v961, 0
  %v1024 = vsel %vm252, %v962, 0
  %1026 = vmatprep.subr.bf16.mxu0 0
  %1027 = vmatpush1.bf16.msra.mxu0 0
  %1028 = vmatprep.subr.bf16.mxu0 0
  %1029 = vmatpush1.bf16.msra.mxu0 0
  %1030 = vmatprep.subr.bf16.mxu0 0
  %1031 = vmatpush1.bf16.msra.mxu0 0
  %1032 = vmatprep.subr.bf16.mxu0 0
  %1033 = vmatpush1.bf16.msra.mxu0 0
  %1034 = vmatprep.subr.bf16.mxu0 0
  %1035 = vmatpush1.bf16.msra.mxu0 %v997
  %1036 = vmatprep.subr.bf16.mxu0 0
  %1037 = vmatpush1.bf16.msra.mxu0 %v996
  %1038 = vmatprep.subr.bf16.mxu0 0
  %1039 = vmatpush1.bf16.msra.mxu0 %v995
  %1040 = vmatprep.subr.bf16.mxu0 0
  %1041 = vmatpush1.bf16.msra.mxu0 %v994
  %1042 = vmatprep.subr.bf16.mxu0 0
  %1043 = vmatpush2.bf16.msra.mxu0 0
  %1044 = vmatprep.subr.bf16.mxu0 0
  %1045 = vmatpush2.bf16.msra.mxu0 0
  %1046 = vmatprep.subr.bf16.mxu0 0
  %1047 = vmatpush2.bf16.msra.mxu0 0
  %1048 = vmatprep.subr.bf16.mxu0 0
  %1049 = vmatpush2.bf16.msra.mxu0 0
  %1050 = vmatprep.subr.bf16.mxu0 0
  %1051 = vmatpush2.bf16.msra.mxu0 0
  %1052 = vmatprep.subr.bf16.mxu0 0
  %1053 = vmatpush2.bf16.msra.mxu0 0
  %1054 = vmatprep.subr.bf16.mxu0 0
  %1055 = vmatpush2.bf16.msra.mxu0 0
  %1056 = vmatprep.subr.bf16.mxu0 0
  %1057 = vmatpush2.bf16.msra.mxu0 0
  %1058 = vmatprep.mubr.bf16.mxu0 0
  %1059 = vmatmul.mubr.bf16.gmra.mxu0 %v1003
  %v1060 = vpop.f32.mrf.mxu0
  %v1061 = vadd.f32 %v976, %v1060
  %v1062 = vpop.f32.mrf.mxu0
  %v1063 = vpop.f32.mrf.mxu0
  %v1064 = vadd.f32 %v976, %v1063
  %v1065 = vpop.f32.mrf.mxu0
  %1066 = vmatprep.mubr.bf16.mxu0 0
  %1067 = vmatmul.mubr.bf16.gmra.mxu0 %v1006
  %v1068 = vpop.f32.mrf.mxu0
  %v1069 = vadd.f32 %v976, %v1068
  %v1070 = vpop.f32.mrf.mxu0
  %v1071 = vpop.f32.mrf.mxu0
  %v1072 = vadd.f32 %v976, %v1071
  %v1073 = vpop.f32.mrf.mxu0
  %1074 = vmatprep.mubr.bf16.mxu0 0
  %1075 = vmatmul.mubr.bf16.gmra.mxu0 %v1009
  %v1076 = vpop.f32.mrf.mxu0
  %v1077 = vadd.f32 %v976, %v1076
  %v1078 = vpop.f32.mrf.mxu0
  %v1079 = vpop.f32.mrf.mxu0
  %v1080 = vadd.f32 %v976, %v1079
  %v1081 = vpop.f32.mrf.mxu0
  %1082 = vmatprep.mubr.bf16.mxu0 0
  %1083 = vmatmul.mubr.bf16.gmra.mxu0 %v1012
  %v1084 = vpop.f32.mrf.mxu0
  %v1085 = vadd.f32 %v976, %v1084
  %v1086 = vpop.f32.mrf.mxu0
  %v1087 = vpop.f32.mrf.mxu0
  %v1088 = vadd.f32 %v976, %v1087
  %v1089 = vpop.f32.mrf.mxu0
  %1090 = vmatprep.mubr.bf16.mxu0 0
  %1091 = vmatmul.mubr.bf16.gmra.mxu0 %v1015
  %v1092 = vpop.f32.mrf.mxu0
  %v1093 = vadd.f32 %v976, %v1092
  %v1094 = vpop.f32.mrf.mxu0
  %v1095 = vpop.f32.mrf.mxu0
  %v1096 = vadd.f32 %v976, %v1095
  %v1097 = vpop.f32.mrf.mxu0
  %1098 = vmatprep.mubr.bf16.mxu0 0
  %1099 = vmatmul.mubr.bf16.gmra.mxu0 %v1018
  %v1100 = vpop.f32.mrf.mxu0
  %v1101 = vadd.f32 %v976, %v1100
  %v1102 = vpop.f32.mrf.mxu0
  %v1103 = vpop.f32.mrf.mxu0
  %v1104 = vadd.f32 %v976, %v1103
  %v1105 = vpop.f32.mrf.mxu0
  %1106 = vmatprep.mubr.bf16.mxu0 0
  %1107 = vmatmul.mubr.bf16.gmra.mxu0 %v1021
  %v1108 = vpop.f32.mrf.mxu0
  %v1109 = vadd.f32 %v976, %v1108
  %v1110 = vpop.f32.mrf.mxu0
  %v1111 = vpop.f32.mrf.mxu0
  %v1112 = vadd.f32 %v976, %v1111
  %v1113 = vpop.f32.mrf.mxu0
  %1114 = vmatprep.mubr.bf16.mxu0 0
  %1115 = vmatmul.mubr.bf16.gmra.mxu0 %v1024
  %v1116 = vpop.f32.mrf.mxu0
  %v1117 = vadd.f32 %v976, %v1116
  %v1118 = vpop.f32.mrf.mxu0
  %v1119 = vpop.f32.mrf.mxu0
  %v1120 = vadd.f32 %v976, %v1119
  %v1121 = vpop.f32.mrf.mxu0
  %1122 = vdwg.mxu0
  %vm1123 = vcmask 130048
  %1124 = vst.msk [vmem:[%s7] sm:$0xff] %vm1123, %v1061
  %1125 = vst.msk [vmem:[%s7 + $0x8] sm:$0xff] %vm1123, %v1064
  %1126 = vst.msk [vmem:[%s7 + $0x10] sm:$0xff] %vm1123, %v1069
  %1127 = vst.msk [vmem:[%s7 + $0x18] sm:$0xff] %vm1123, %v1072
  %1128 = vst.msk [vmem:[%s7 + $0x20] sm:$0xff] %vm1123, %v1077
  %1129 = vst.msk [vmem:[%s7 + $0x28] sm:$0xff] %vm1123, %v1080
  %1130 = vst.msk [vmem:[%s7 + $0x30] sm:$0xff] %vm1123, %v1085
  %1131 = vst.msk [vmem:[%s7 + $0x38] sm:$0xff] %vm1123, %v1088
  %1132 = vst.msk [vmem:[%s7 + $0x40] sm:$0xff] %vm1123, %v1093
  %1133 = vst.msk [vmem:[%s7 + $0x48] sm:$0xff] %vm1123, %v1096
  %1134 = vst.msk [vmem:[%s7 + $0x50] sm:$0xff] %vm1123, %v1101
  %1135 = vst.msk [vmem:[%s7 + $0x58] sm:$0xff] %vm1123, %v1104
  %1136 = vst.msk [vmem:[%s7 + $0x60] sm:$0xff] %vm1123, %v1109
  %1137 = vst.msk [vmem:[%s7 + $0x68] sm:$0xff] %vm1123, %v1112
  %1138 = vst.msk [vmem:[%s7 + $0x70] sm:$0xff] %vm1123, %v1117
  %1139 = vst.msk [vmem:[%s7 + $0x78] sm:$0xff] %vm1123, %v1120
  // Predicated region
  $region30: #{tpu_custom_call.1} parent=0 // pred_check
    _
  $region31: #{tpu_custom_call.1} parent=0 // pred_check_branch
    %1141 = sbr.rel (0) target = $region33
  $region32: #{tpu_custom_call.1} parent=0 // pred_region
    _
  $region33: #{tpu_custom_call.1} parent=0 // pred_fallthru
    _
  // Predicated region
  $region34: #{tpu_custom_call.1} parent=0 // pred_check
    _
  $region35: #{tpu_custom_call.1} parent=0 // pred_check_branch
    %1143 = sbr.rel (0) target = $region37
  $region36: #{tpu_custom_call.1} parent=0 // pred_region
    _
  $region37: #{tpu_custom_call.1} parent=0 // pred_fallthru
    _

</llo_original>
